<compile_context>
chip_gen: v5e
topology: v5e:2x2
jax: 0.10.0
libtpu: 0.0.40
codegen_flags: <defaults>
</compile_context>

<pallas_src>
import numpy as np
import jax
import jax.numpy as jnp
from jax.experimental import pallas as pl
from jax.experimental.pallas import tpu as pltpu


def _round_up(x: int, m: int) -> int:
    return (x + m - 1) // m * m


def self_attention_pallas(p, w, *, mxu_dtype=jnp.bfloat16, tq=None, tb=None):
    """DIIN self-attention.

    p: (B, P, D) float32 activations.
    w: (1, 3*D) float32, nn.Linear(3*D, 1, bias=False).weight.
    Returns (B, P, D) in p.dtype.
    """
    B, P, D = p.shape
    assert w.shape == (1, 3 * D)

    # ---- TPU-friendly padded shapes -------------------------------------
    d_pad = max(128, _round_up(D, 128))              # lane-dense last dim
    if tq is None:                                   # MXU-aligned query tile
        tq = 256 if P >= 256 else _round_up(P, 8)
    tq = max(8, _round_up(int(tq), 8))
    p_pad_len = _round_up(P, tq)

    if tb is None:                                   # pack batches per step so the
        kv_bytes = p_pad_len * d_pad * 4             # resident blocks are not tiny
        tb = max(1, min(B, (512 * 1024) // max(kv_bytes, 1), 8))
    tb = max(1, int(tb))
    b_pad = _round_up(B, tb)

    p_f32 = p.astype(jnp.float32)
    p_padded = jnp.zeros((b_pad, p_pad_len, d_pad), jnp.float32)
    p_padded = p_padded.at[:B, :P, :D].set(p_f32)
    w3 = jnp.zeros((3, d_pad), jnp.float32).at[:, :D].set(
        w.reshape(3, D).astype(jnp.float32))

    n_b = b_pad // tb
    n_q = p_pad_len // tq

    def kernel(w_ref, q_ref, kv_ref, o_ref):
        w_up = w_ref[0:1, :]                          # (1, Dp)
        w_down = w_ref[2:3, :]                        # (1, Dp)
        # NOTE: w_ref[1] (w_mid) adds a per-query constant to every softmax
        # logit, which cancels in the softmax -> intentionally unused.
        q = q_ref[...]                                # (TB, TQ, Dp) f32
        kv = kv_ref[...]                              # (TB, Pp, Dp) f32

        # Fold the w_up bias into the contraction: A[i,j] = <q_i*w_down + w_up, k_j>
        lhs = q * w_down + w_up                       # (TB, TQ, Dp)  VPU

        scores = jnp.einsum(
            "bqd,bkd->bqk",
            lhs.astype(mxu_dtype), kv.astype(mxu_dtype),
            preferred_element_type=jnp.float32)       # (TB, TQ, Pp)  MXU

        if P < p_pad_len:                             # mask zero-padded keys
            kmask = jax.lax.broadcasted_iota(
                jnp.int32, (1, 1, p_pad_len), 2) < P
            scores = jnp.where(kmask, scores, -jnp.inf)

        # f32 softmax numerics; normalization deferred to the (TQ, Dp) output.
        m = jnp.max(scores, axis=-1, keepdims=True)
        e = jnp.exp(scores - m)                       # (TB, TQ, Pp)
        denom = jnp.sum(e, axis=-1, keepdims=True)    # (TB, TQ, 1)

        out_un = jnp.einsum(
            "bqk,bkd->bqd",
            e.astype(mxu_dtype), kv.astype(mxu_dtype),
            preferred_element_type=jnp.float32)       # (TB, TQ, Dp)  MXU

        o_ref[...] = (out_un * pl.reciprocal(denom, approx=True)
                      ).astype(o_ref.dtype)

    # ---- VMEM budget: double-buffered I/O blocks + live intermediates ----
    io_bytes = 4 * (2 * tb * tq * d_pad + tb * p_pad_len * d_pad + 3 * d_pad)
    inter_bytes = (4 * 2 * tb * tq * p_pad_len                       # scores, e (f32)
                   + 2 * (tb * tq * d_pad + tb * p_pad_len * d_pad   # bf16 copies
                          + tb * tq * p_pad_len))
    vmem_limit = int(min(max(2 * io_bytes + 2 * inter_bytes, 32 << 20), 56 << 20))

    out_padded = pl.pallas_call(
        kernel,
        out_shape=jax.ShapeDtypeStruct((b_pad, p_pad_len, d_pad), p.dtype),
        grid_spec=pltpu.PrefetchScalarGridSpec(
            num_scalar_prefetch=0,
            grid=(n_b, n_q),                          # query tile is innermost ->
            in_specs=[                                # kv block stays resident
                pl.BlockSpec((3, d_pad), lambda b, qi: (0, 0)),
                pl.BlockSpec((tb, tq, d_pad), lambda b, qi: (b, qi, 0)),
                pl.BlockSpec((tb, p_pad_len, d_pad), lambda b, qi: (b, 0, 0)),
            ],
            out_specs=pl.BlockSpec((tb, tq, d_pad), lambda b, qi: (b, qi, 0)),
        ),
        compiler_params=pltpu.CompilerParams(
            dimension_semantics=("parallel", "parallel"),
            vmem_limit_bytes=vmem_limit),
    )(w3, p_padded, p_padded)

    return out_padded[:B, :P, :D]


def self_attention_ref(p, w):
    """Pure-JAX reference mirroring the PyTorch forward exactly (f32)."""
    B, P, D = p.shape
    mid = jnp.broadcast_to(p[:, :, :, None], (B, P, D, P))   # mid[b,i,k,j] = p[b,i,k]
    up = jnp.transpose(mid, (0, 3, 2, 1))                    # up[b,i,k,j]  = p[b,j,k]
    alpha = jnp.concatenate([up, mid, up * mid], axis=2)     # (B, P, 3D, P)
    A = jnp.einsum("k,bxky->bxy", w[0], alpha)               # (B, P, P)
    sA = jax.nn.softmax(A, axis=2)
    return jnp.einsum("bxy,byd->bxd", sA, p)


if __name__ == "__main__":
    batch, seq, hidden = 2, 8, 32

    key = jax.random.PRNGKey(0)
    k_p, k_w = jax.random.split(key)
    p = jax.random.normal(k_p, (batch, seq, hidden), dtype=jnp.float32)
    # nn.Linear(3*hidden, 1, bias=False).weight -> shape (1, 3*hidden)
    bound = 1.0 / np.sqrt(3 * hidden)
    w = jax.random.uniform(k_w, (1, 3 * hidden), dtype=jnp.float32,
                           minval=-bound, maxval=bound)

    out = jax.block_until_ready(self_attention_pallas(p, w))
    ref = jax.block_until_ready(self_attention_ref(p, w))

    # bf16 MXU operands (f32 accumulation) -> tolerance looser than pure f32.
    np.testing.assert_allclose(np.asarray(out), np.asarray(ref),
                               rtol=2e-2, atol=2e-2)

    print("KERNEL_OK")
</pallas_src>

<mosaic_0001>
module attributes {stable_mosaic.version = 11 : i64} {
  func.func @kernel(%arg0: i32, %arg1: i32, %arg2: memref<3x128xf32, #tpu.memory_space<vmem>>, %arg3: memref<2x8x128xf32, #tpu.memory_space<vmem>>, %arg4: memref<2x8x128xf32, #tpu.memory_space<vmem>>, %arg5: memref<2x8x128xf32, #tpu.memory_space<vmem>>) attributes {dimension_semantics = [#tpu.dimension_semantics<parallel>, #tpu.dimension_semantics<parallel>], iteration_bounds = array<i64: 1, 1>, scalar_prefetch = 0 : i64, scratch_operands = 0 : i64, tpu.core_type = #tpu.core_type<tc>, window_params = [{pipeline_mode = #tpu.pipeline_mode<synchronous>, transform_indices = @transform_0, window_bounds = array<i64: 3, 128>}, {transform_indices = @transform_1, window_bounds = array<i64: 2, 8, 128>}, {transform_indices = @transform_2, window_bounds = array<i64: 2, 8, 128>}, {transform_indices = @transform_3, window_bounds = array<i64: 2, 8, 128>}]} {
    %c0 = arith.constant 0 : index
    %c0_0 = arith.constant 0 : index
    %0 = vector.load %arg2[%c0, %c0_0] : memref<3x128xf32, #tpu.memory_space<vmem>>, vector<1x128xf32>
    %c2 = arith.constant 2 : index
    %c0_1 = arith.constant 0 : index
    %1 = vector.load %arg2[%c2, %c0_1] : memref<3x128xf32, #tpu.memory_space<vmem>>, vector<1x128xf32>
    %c0_2 = arith.constant 0 : index
    %c0_3 = arith.constant 0 : index
    %c0_4 = arith.constant 0 : index
    %2 = vector.load %arg3[%c0_2, %c0_3, %c0_4] : memref<2x8x128xf32, #tpu.memory_space<vmem>>, vector<2x8x128xf32>
    %c0_5 = arith.constant 0 : index
    %c0_6 = arith.constant 0 : index
    %c0_7 = arith.constant 0 : index
    %3 = vector.load %arg4[%c0_5, %c0_6, %c0_7] : memref<2x8x128xf32, #tpu.memory_space<vmem>>, vector<2x8x128xf32>
    %4 = vector.shape_cast %1 : vector<1x128xf32> to vector<1x1x128xf32>
    %5 = vector.broadcast %4 : vector<1x1x128xf32> to vector<2x8x128xf32>
    %6 = arith.mulf %2, %5 : vector<2x8x128xf32>
    %7 = vector.shape_cast %0 : vector<1x128xf32> to vector<1x1x128xf32>
    %8 = vector.broadcast %7 : vector<1x1x128xf32> to vector<2x8x128xf32>
    %9 = arith.addf %6, %8 : vector<2x8x128xf32>
    %10 = arith.truncf %9 : vector<2x8x128xf32> to vector<2x8x128xbf16>
    %11 = arith.truncf %3 : vector<2x8x128xf32> to vector<2x8x128xbf16>
    "tpu.trace_start"() <{level = 10 : i32, message = "bqd,bkd->bqk"}> : () -> ()
    %cst = arith.constant dense<0.000000e+00> : vector<2x8x8xf32>
    %12 = tpu.matmul %10, %11, %cst {dimension_numbers = #tpu.dot_dimension_numbers<[2], [2], [1], [1], [0, 0, 0, 1, 1, 1], [0], [0]>} : vector<2x8x128xbf16>, vector<2x8x128xbf16>, vector<2x8x8xf32> -> vector<2x8x8xf32>
    "tpu.trace_stop"() : () -> ()
    %cst_8 = arith.constant dense<0xFF800000> : vector<2x8xf32>
    %13 = vector.multi_reduction <maximumf>, %12, %cst_8 [2] : vector<2x8x8xf32> to vector<2x8xf32>
    %14 = vector.shape_cast %13 : vector<2x8xf32> to vector<2x8x1xf32>
    %15 = vector.broadcast %14 : vector<2x8x1xf32> to vector<2x8x8xf32>
    %16 = arith.subf %12, %15 : vector<2x8x8xf32>
    %17 = math.exp %16 : vector<2x8x8xf32>
    %cst_9 = arith.constant dense<0.000000e+00> : vector<2x8xf32>
    %18 = vector.multi_reduction <add>, %17, %cst_9 [2] : vector<2x8x8xf32> to vector<2x8xf32>
    %19 = vector.shape_cast %18 : vector<2x8xf32> to vector<2x8x1xf32>
    %20 = arith.truncf %17 : vector<2x8x8xf32> to vector<2x8x8xbf16>
    %21 = arith.truncf %3 : vector<2x8x128xf32> to vector<2x8x128xbf16>
    "tpu.trace_start"() <{level = 10 : i32, message = "bqk,bkd->bqd"}> : () -> ()
    %cst_10 = arith.constant dense<0.000000e+00> : vector<2x8x128xf32>
    %22 = tpu.matmul %20, %21, %cst_10 {dimension_numbers = #tpu.dot_dimension_numbers<[2], [1], [1], [2], [0, 0, 0, 1, 1, 2], [0], [0]>} : vector<2x8x8xbf16>, vector<2x8x128xbf16>, vector<2x8x128xf32> -> vector<2x8x128xf32>
    "tpu.trace_stop"() : () -> ()
    %23 = tpu.reciprocal %19 {approx = true} : vector<2x8x1xf32> -> vector<2x8x1xf32>
    %24 = vector.broadcast %23 : vector<2x8x1xf32> to vector<2x8x128xf32>
    %25 = arith.mulf %22, %24 : vector<2x8x128xf32>
    %c0_11 = arith.constant 0 : index
    %c0_12 = arith.constant 0 : index
    %c0_13 = arith.constant 0 : index
    %26 = vector.load %arg5[%c0_11, %c0_12, %c0_13] : memref<2x8x128xf32, #tpu.memory_space<vmem>>, vector<2x8x128xf32>
    tpu.vector_store %arg5[%c0_11, %c0_12, %c0_13], %25 {strides = array<i32>} : memref<2x8x128xf32, #tpu.memory_space<vmem>>, vector<2x8x128xf32>,
    return
  }
  func.func @transform_0(%arg0: i32, %arg1: i32) -> (i32, i32) {
    %c0_i32 = arith.constant 0 : i32
    %c0_i32_0 = arith.constant 0 : i32
    %c0_i32_1 = arith.constant 0 : i32
    return %c0_i32, %c0_i32_0 : i32, i32
  }
  func.func @transform_1(%arg0: i32, %arg1: i32) -> (i32, i32, i32) {
    %c0_i32 = arith.constant 0 : i32
    %c0_i32_0 = arith.constant 0 : i32
    return %arg0, %arg1, %c0_i32 : i32, i32, i32
  }
  func.func @transform_2(%arg0: i32, %arg1: i32) -> (i32, i32, i32) {
    %c0_i32 = arith.constant 0 : i32
    %c0_i32_0 = arith.constant 0 : i32
    %c0_i32_1 = arith.constant 0 : i32
    return %arg0, %c0_i32, %c0_i32_0 : i32, i32, i32
  }
  func.func @transform_3(%arg0: i32, %arg1: i32) -> (i32, i32, i32) {
    %c0_i32 = arith.constant 0 : i32
    %c0_i32_0 = arith.constant 0 : i32
    return %arg0, %arg1, %c0_i32 : i32, i32, i32
  }
}

</mosaic_0001>

<llo_original>
// kernel: tpu_custom_call.1
$region0: #{tpu_custom_call.1}
  #allocation0 [shape = 'u32[]', space=smem, size = 0x4, offset = 0x4, fixed_abs, tag = 'smem constant byte address 0x4 - core index']
  #allocation1 [shape = 'u32[72,128]{1,0:T(1,128)}', space=vmem, size = 0x9000, scoped, tag = 'internal scratch']
  %s0 = inlined_call_operand.hbm [shape: f32[3,128], index: 0, kind: input, shape index: {}]
  %s1 = inlined_call_operand.hbm [shape: f32[2,8,128], index: 1, kind: input, shape index: {}]
  %s2 = inlined_call_operand.hbm [shape: f32[2,8,128], index: 2, kind: input, shape index: {}]
  %s3 = inlined_call_operand.hbm [shape: f32[2,8,128], index: 3, kind: output, shape index: {}]
  %s4 = sld [smem:[#allocation0]]
  $region34: #{tpu_custom_call.1} parent=0
    _
  %s6 = ssub.s32 1, %s4
  %s7 = scalar_select 0, %s6, %s4
  $region1: #{tpu_custom_call.1} parent=0
    #allocation2 [shape = 'u8[2048]{0}', space=vmem, size = 0x800, scoped, tag = 'input window, operand 0, single buffered']
    #allocation3 [shape = 's32[1]{0}', space=sflag, size = 0x4, scoped, tag = 'scoped memory for tpu_custom_call.1']
    #allocation4 [shape = 's32[1]{0}', space=sflag, size = 0x4, scoped, tag = 'scoped memory for tpu_custom_call.1']
    #allocation5 [shape = 'u8[8192]{0}', space=vmem, size = 0x2000, scoped, tag = 'input window, operand 1, single buffered']
    #allocation6 [shape = 's32[1]{0}', space=sflag, size = 0x4, scoped, tag = 'scoped memory for tpu_custom_call.1']
    #allocation7 [shape = 'u8[8192]{0}', space=vmem, size = 0x2000, scoped, tag = 'input window, operand 2, single buffered']
    #allocation8 [shape = 'u8[8192]{0}', space=vmem, size = 0x2000, scoped, tag = 'output window, operand 0, single buffered']
    %8 = vsyncpa [#allocation3], 0
    %9 = vsyncpa [#allocation6], 0
    %10 = vsyncpa [#allocation4], 0
    // Predicated region
    $region2: #{tpu_custom_call.1} parent=1 // pred_check
      _
    $region3: #{tpu_custom_call.1} parent=1 // pred_check_branch
      %12 = sbr.rel (0) target = $region5
    $region4: #{tpu_custom_call.1} parent=1 // pred_region
      %14 = vsyncadd [#allocation3], 0
      %s16 = sshll.u32 %s0, 4
      %s17 = int_to_ptr.hbm [resolvable:$true] %s16
      %s18 = sshll.u32 [#allocation2], 4
      %s19 = int_to_ptr.vmem [resolvable:$true] %s18
      %21 = dma.hbm_to_vmem [thread:$0]  %s17, 64, %s19, [#allocation3]
    $region5: #{tpu_custom_call.1} parent=1 // pred_fallthru
      _
    // Predicated region
    $region6: #{tpu_custom_call.1} parent=1 // pred_check
      _
    $region7: #{tpu_custom_call.1} parent=1 // pred_check_branch
      %23 = sbr.rel (0) target = $region9
    $region8: #{tpu_custom_call.1} parent=1 // pred_region
      %25 = vsyncadd [#allocation6], 0
      %s26 = sshll.u32 %s1, 4
      %s27 = int_to_ptr.hbm [resolvable:$true] %s26
      %s28 = sshll.u32 [#allocation5], 4
      %s29 = int_to_ptr.vmem [resolvable:$true] %s28
      %34 = dma.hbm_to_vmem [thread:$0]  %s27, 256, %s29, [#allocation6], 128, 128, 8
    $region9: #{tpu_custom_call.1} parent=1 // pred_fallthru
      _
    // Predicated region
    $region10: #{tpu_custom_call.1} parent=1 // pred_check
      _
    $region11: #{tpu_custom_call.1} parent=1 // pred_check_branch
      %36 = sbr.rel (0) target = $region13
    $region12: #{tpu_custom_call.1} parent=1 // pred_region
      %38 = vsyncadd [#allocation6], 0
      %s39 = sshll.u32 %s2, 4
      %s40 = int_to_ptr.hbm [resolvable:$true] %s39
      %s41 = sshll.u32 [#allocation7], 4
      %s42 = int_to_ptr.vmem [resolvable:$true] %s41
      %47 = dma.hbm_to_vmem [thread:$0]  %s40, 256, %s42, [#allocation6], 128, 128, 8
    $region13: #{tpu_custom_call.1} parent=1 // pred_fallthru
      _
    // Predicated region
    $region14: #{tpu_custom_call.1} parent=1 // pred_check
      _
    $region15: #{tpu_custom_call.1} parent=1 // pred_check_branch
      %49 = sbr.rel (0) target = $region17
    $region16: #{tpu_custom_call.1} parent=1 // pred_region
      %51 = dma.done [#allocation3], 64
    $region17: #{tpu_custom_call.1} parent=1 // pred_fallthru
      _
    // Predicated region
    $region18: #{tpu_custom_call.1} parent=1 // pred_check
      _
    $region19: #{tpu_custom_call.1} parent=1 // pred_check_branch
      %53 = sbr.rel (0) target = $region21
    $region20: #{tpu_custom_call.1} parent=1 // pred_region
      %55 = dma.done [#allocation6], 256
    $region21: #{tpu_custom_call.1} parent=1 // pred_fallthru
      _
    // Predicated region
    $region22: #{tpu_custom_call.1} parent=1 // pred_check
      _
    $region23: #{tpu_custom_call.1} parent=1 // pred_check_branch
      %57 = sbr.rel (0) target = $region25
    $region24: #{tpu_custom_call.1} parent=1 // pred_region
      %59 = dma.done [#allocation6], 256
    $region25: #{tpu_custom_call.1} parent=1 // pred_fallthru
      _
    %v61 = vld [vmem:[#allocation2] sm:$0x1]
    %v62 = vld [vmem:[#allocation2 + $0x2] sm:$0x1]
    %v63 = vld [vmem:[#allocation5] sm:$0xff]
    %v64 = vld [vmem:[#allocation5 + $0x8] sm:$0xff]
    %v65 = vld [vmem:[#allocation7] sm:$0xff]
    %v66 = vld [vmem:[#allocation7 + $0x8] sm:$0xff]
    %v67 = vperm.slane %v62, 0
    %v68 = vmul.f32 %v63, %v67
    %v69 = vmul.f32 %v64, %v67
    %v70 = vperm.slane %v61, 0
    %v71 = vadd.f32 %v68, %v70
    %v72 = vadd.f32 %v69, %v70
    %v73 = vpack.c.bf16 %v71, %v71
    %v74 = vpack.c.bf16 %v72, %v72
    %v75 = vpack.c.bf16 %v65, %v65
    %v76 = vpack.c.bf16 %v66, %v66
    %77 = vmatpush.bf16.xpose.msra.mxu0 0
    %78 = vmatpush.bf16.xpose.msra.mxu0 0
    %79 = vmatpush.bf16.xpose.msra.mxu0 0
    %80 = vmatpush.bf16.xpose.msra.mxu0 0
    %81 = vmatpush.bf16.xpose.msra.mxu0 0
    %82 = vmatpush.bf16.xpose.msra.mxu0 0
    %83 = vmatpush.bf16.xpose.msra.mxu0 0
    %84 = vmatpush.bf16.xpose.msra.mxu0 %v75
    %85 = vmatmul.bf16.gmra.mxu0 %v73
    %v86 = vpop.f32.mrf.mxu0
    %v87 = vadd.f32 0.0, %v86
    %v88 = vpop.f32.mrf.mxu0
    %89 = vdwg.mxu0
    %90 = vmatpush.bf16.xpose.msra.mxu0 0
    %91 = vmatpush.bf16.xpose.msra.mxu0 0
    %92 = vmatpush.bf16.xpose.msra.mxu0 0
    %93 = vmatpush.bf16.xpose.msra.mxu0 0
    %94 = vmatpush.bf16.xpose.msra.mxu0 0
    %95 = vmatpush.bf16.xpose.msra.mxu0 0
    %96 = vmatpush.bf16.xpose.msra.mxu0 0
    %97 = vmatpush.bf16.xpose.msra.mxu0 %v76
    %98 = vmatmul.bf16.gmra.mxu0 %v74
    %v99 = vpop.f32.mrf.mxu0
    %v100 = vadd.f32 0.0, %v99
    %v101 = vpop.f32.mrf.mxu0
    %102 = vdwg.mxu0
    %vm103 = vcmask 64512
    %v104 = vsel %vm103, %v87, -inf
    %105 = vmax.xlane.f32.xlu0 %v104
    %v106 = vpop.xlane.xlu0 %105
    %v107 = vsel %vm103, %v100, -inf
    %108 = vmax.xlane.f32.xlu0 %v107
    %v109 = vpop.xlane.xlu0 %108
    %v110 = vsub.f32 %v87, %v106
    %v111 = vsub.f32 %v100, %v109
    %v112 = vmul.f32 %v110, 1.442695
    %v113 = vpow.pop %v112
    %v114 = vmul.f32 %v111, 1.442695
    %v115 = vpow.pop %v114
    %v116 = vsel %vm103, %v113, 0.0
    %117 = vadd.xlane.f32.xlu0 %v116
    %v118 = vpop.xlane.xlu0 %117
    %v119 = vsel %vm103, %v115, 0.0
    %120 = vadd.xlane.f32.xlu0 %v119
    %v121 = vpop.xlane.xlu0 %120
    %v122 = vpack.c.bf16 %v113, %v113
    %v123 = vpack.c.bf16 %v115, %v115
    %v125 = vsel %vm103, %v122, 0
    %vm127 = vcmask 1043456
    %v129 = vsel %vm127, %v75, 0
    %131 = vmatpush.bf16.msra.mxu0 0
    %132 = vmatpush.bf16.msra.mxu0 0
    %133 = vmatpush.bf16.msra.mxu0 0
    %134 = vmatpush.bf16.msra.mxu0 0
    %135 = vmatpush.bf16.msra.mxu0 0
    %136 = vmatpush.bf16.msra.mxu0 0
    %137 = vmatpush.bf16.msra.mxu0 0
    %138 = vmatpush.bf16.msra.mxu0 %v129
    %139 = vmatmul.bf16.gmra.mxu0 %v125
    %v140 = vpop.f32.mrf.mxu0
    %v141 = vadd.f32 0.0, %v140
    %v142 = vpop.f32.mrf.mxu0
    %143 = vdwg.mxu0
    %v145 = vsel %vm103, %v123, 0
    %v148 = vsel %vm127, %v76, 0
    %150 = vmatpush.bf16.msra.mxu0 0
    %151 = vmatpush.bf16.msra.mxu0 0
    %152 = vmatpush.bf16.msra.mxu0 0
    %153 = vmatpush.bf16.msra.mxu0 0
    %154 = vmatpush.bf16.msra.mxu0 0
    %155 = vmatpush.bf16.msra.mxu0 0
    %156 = vmatpush.bf16.msra.mxu0 0
    %157 = vmatpush.bf16.msra.mxu0 %v148
    %158 = vmatmul.bf16.gmra.mxu0 %v145
    %v159 = vpop.f32.mrf.mxu0
    %v160 = vadd.f32 0.0, %v159
    %v161 = vpop.f32.mrf.mxu0
    %162 = vdwg.mxu0
    %v163 = vrcp.pop %v118
    %v164 = vrcp.pop %v121
    %v165 = vmul.f32 %v141, %v163
    %v166 = vmul.f32 %v160, %v164
    %167 = vst [vmem:[#allocation8] sm:$0xff] %v165
    %168 = vst [vmem:[#allocation8 + $0x8] sm:$0xff] %v166
    // Predicated region
    $region26: #{tpu_custom_call.1} parent=1 // pred_check
      _
    $region27: #{tpu_custom_call.1} parent=1 // pred_check_branch
      %170 = sbr.rel (0) target = $region29
    $region28: #{tpu_custom_call.1} parent=1 // pred_region
      %172 = vsyncadd [#allocation4], 0
      %s173 = sshll.u32 [#allocation8], 4
      %s174 = int_to_ptr.vmem [resolvable:$true] %s173
      %s175 = sshll.u32 %s3, 4
      %s176 = int_to_ptr.hbm [resolvable:$true] %s175
      %181 = dma.vmem_to_hbm [thread:$0]  %s174, 256, %s176, [#allocation4], 128, 128, 8
    $region29: #{tpu_custom_call.1} parent=1 // pred_fallthru
      _
    // Predicated region
    $region30: #{tpu_custom_call.1} parent=1 // pred_check
      _
    $region31: #{tpu_custom_call.1} parent=1 // pred_check_branch
      %183 = sbr.rel (0) target = $region33
    $region32: #{tpu_custom_call.1} parent=1 // pred_region
      %185 = dma.done [#allocation4], 256
    $region33: #{tpu_custom_call.1} parent=1 // pred_fallthru
      _
    %186 = vsyncpa [#allocation3], 1
    %187 = vsyncpa [#allocation6], 1
    %188 = vsyncpa [#allocation4], 1

</llo_original>
